<compile_context>
chip_gen: v7x
topology: tpu7x:2x2x1
jax: 0.10.0
libtpu: 0.0.40
codegen_flags: <defaults>
</compile_context>

<pallas_src>
import functools

import jax
import jax.numpy as jnp
from jax.experimental import pallas as pl
from jax.experimental.pallas import tpu as pltpu


def _round_up(n, m):
    return (n + m - 1) // m * m


# ------------------------------- kernel -------------------------------------


def _relevance_kernel(x_ref, p_ref, out_ref, *, two_e, two_h, lp, use_bf16):
    # x_ref:   (tb, 2E)       [doc | query] rows for this batch tile
    # p_ref:   (4H + Lp, max(2E,2H) + 8)  packed parameter slab
    # out_ref: (1, tb)        lane-dense scores for this batch tile
    kw = max(two_e, two_h)
    mm = jnp.bfloat16 if use_bf16 else jnp.float32

    # Batch-on-lanes: one tile transpose at entry (XLU slot, otherwise idle),
    # so every matmul below has N = tb instead of N = 2H.
    x_t = jnp.transpose(x_ref[...].astype(jnp.float32))            # (2E, tb)

    w1t = p_ref[0:two_h, 0:two_e].astype(mm)                       # (2H, 2E)
    w2t = p_ref[two_h:2 * two_h, 0:two_h].astype(mm)               # (2H, 2H)
    w3t = p_ref[2 * two_h:2 * two_h + lp, 0:two_h].astype(mm)      # (Lp, 2H) = [Wd3;-Wq3]^T
    b1 = p_ref[0:two_h, kw:kw + 1]                                  # (2H, 1) f32
    b2 = p_ref[0:two_h, kw + 1:kw + 2]                              # (2H, 1) f32
    b3 = p_ref[0:lp, kw + 2:kw + 3]                                 # (Lp, 1) f32 (rows >= L are 0)

    h = jnp.maximum(
        jnp.dot(w1t, x_t.astype(mm), preferred_element_type=jnp.float32) + b1, 0.0)
    h = jnp.maximum(
        jnp.dot(w2t, h.astype(mm), preferred_element_type=jnp.float32) + b2, 0.0)
    # diff = doc_latent - query_latent, rows >= L are structurally zero.
    diff = jnp.dot(w3t, h.astype(mm), preferred_element_type=jnp.float32) + b3  # (Lp, tb)

    # Sublane reduce -> unmasked, lane-dense (1, tb) store.
    sq = jnp.sum(diff * diff, axis=0, keepdims=True)                # (1, tb)
    # NOTE: forward-only; add an eps inside sqrt if a backward pass is added.
    out_ref[...] = -jnp.sqrt(sq)


# ------------------------------ wrapper -------------------------------------


def _default_min_steps():
    """>=4 grid steps on v7x (2 TensorCores need >=2 steps each); 1 elsewhere."""
    try:
        kind = jax.devices()[0].device_kind.lower()
    except Exception:
        return 1
    return 4 if ("v7" in kind or "tpu7" in kind) else 1


def _pick_batch_tile(batch, *, min_steps=1, max_tile=4096):
    """Largest tile dividing B, preferring lane-dense multiples of 128."""
    cap = min(batch, max_tile)
    for step in (128, 8):
        start = cap // step * step
        for tb in range(start, 0, -step):
            if batch % tb == 0 and batch // tb >= min_steps:
                return tb
    return batch  # single full-array block (always legal)


def pack_params(params, *, embedding_dim, hidden_dim, latent_dim):
    """Pack the 12 Linear params into one (4H+Lp, max(2E,2H)+8) slab (done once)."""
    E, H, L = embedding_dim, hidden_dim, latent_dim
    two_e, two_h, lp = 2 * E, 2 * H, _round_up(L, 8)
    kw = max(two_e, two_h)
    f32 = jnp.float32
    zeh = jnp.zeros((E, H), f32)
    zhh = jnp.zeros((H, H), f32)

    # (out, in) oriented, doc/query fused block-diagonally; last layer fused
    # as [Wd3; -Wq3]^T so one matmul emits doc_latent - query_latent.
    w1t = jnp.block([[params["wd1"], zeh], [zeh, params["wq1"]]]).T            # (2H, 2E)
    w2t = jnp.block([[params["wd2"], zhh], [zhh, params["wq2"]]]).T            # (2H, 2H)
    w3t = jnp.concatenate([params["wd3"], -params["wq3"]], axis=0).T           # (L, 2H)
    w3t = jnp.pad(w3t, ((0, lp - L), (0, 0)))                                  # (Lp, 2H)

    def pad_cols(a):
        return jnp.pad(a, ((0, 0), (0, kw - a.shape[1])))

    wrows = jnp.concatenate([pad_cols(w1t), pad_cols(w2t), pad_cols(w3t)],
                            axis=0).astype(f32)                                # (4H+Lp, kw)

    # Bias columns in 8 extra lanes (already column-oriented for the kernel).
    rows = wrows.shape[0]
    b1 = jnp.concatenate([params["bd1"], params["bq1"]], axis=1)[0]            # (2H,)
    b2 = jnp.concatenate([params["bd2"], params["bq2"]], axis=1)[0]            # (2H,)
    b3 = (params["bd3"] - params["bq3"])[0]                                    # (L,)
    bcols = jnp.zeros((rows, 8), f32)
    bcols = bcols.at[0:two_h, 0].set(b1)
    bcols = bcols.at[0:two_h, 1].set(b2)
    bcols = bcols.at[0:L, 2].set(b3)

    return jnp.concatenate([wrows, bcols], axis=1)                             # (4H+Lp, kw+8)


def latent_embedding_relevance(x, packed_params, *, hidden_dim, latent_dim,
                               batch_tile=None, min_grid_steps=None,
                               use_bf16=False):
    """Forward: x (B, 2*embedding_dim) -> (B,) f32 = -||doc_latent - query_latent||."""
    B, two_e = x.shape
    two_h = 2 * hidden_dim
    lp = _round_up(latent_dim, 8)
    R, KW = packed_params.shape
    assert R == 2 * two_h + lp, "packed_params has unexpected row count"
    assert KW == max(two_e, two_h) + 8, "packed_params has unexpected width"

    if min_grid_steps is None:
        min_grid_steps = _default_min_steps()
    tb = batch_tile if batch_tile is not None else _pick_batch_tile(
        B, min_steps=min_grid_steps)
    assert B % tb == 0, "batch must be divisible by the batch tile"

    kernel = functools.partial(_relevance_kernel, two_e=two_e, two_h=two_h,
                               lp=lp, use_bf16=use_bf16)

    out = pl.pallas_call(
        kernel,
        out_shape=jax.ShapeDtypeStruct((1, B), jnp.float32),
        grid=(B // tb,),
        in_specs=[
            pl.BlockSpec((tb, two_e), lambda i: (i, 0)),    # x batch tile
            pl.BlockSpec((R, KW), lambda i: (0, 0)),        # params: fetched once
        ],
        out_specs=pl.BlockSpec((1, tb), lambda i: (0, i)),   # lane-dense output
        compiler_params=pltpu.CompilerParams(
            dimension_semantics=("parallel",)),
    )(x, packed_params)
    return out[0]


# --------------------------- init & reference --------------------------------


def init_params(key, *, embedding_dim, latent_dim, hidden_dim):
    """PyTorch nn.Linear-style init; weights stored transposed as (in, out)."""
    keys = jax.random.split(key, 6)

    def lin(k, fan_in, fan_out):
        bound = 1.0 / jnp.sqrt(fan_in)
        kw, kb = jax.random.split(k)
        w = jax.random.uniform(kw, (fan_in, fan_out), jnp.float32, -bound, bound)
        b = jax.random.uniform(kb, (1, fan_out), jnp.float32, -bound, bound)
        return w, b

    wd1, bd1 = lin(keys[0], embedding_dim, hidden_dim)
    wd2, bd2 = lin(keys[1], hidden_dim, hidden_dim)
    wd3, bd3 = lin(keys[2], hidden_dim, latent_dim)
    wq1, bq1 = lin(keys[3], embedding_dim, hidden_dim)
    wq2, bq2 = lin(keys[4], hidden_dim, hidden_dim)
    wq3, bq3 = lin(keys[5], hidden_dim, latent_dim)
    return dict(wd1=wd1, bd1=bd1, wd2=wd2, bd2=bd2, wd3=wd3, bd3=bd3,
                wq1=wq1, bq1=bq1, wq2=wq2, bq2=bq2, wq3=wq3, bq3=bq3)


def _reference(x, p):
    E = x.shape[1] // 2
    d, q = x[:, :E], x[:, E:]
    h = jnp.maximum(d @ p["wd1"] + p["bd1"], 0.0)
    h = jnp.maximum(h @ p["wd2"] + p["bd2"], 0.0)
    dl = h @ p["wd3"] + p["bd3"]
    g = jnp.maximum(q @ p["wq1"] + p["bq1"], 0.0)
    g = jnp.maximum(g @ p["wq2"] + p["bq2"], 0.0)
    ql = g @ p["wq3"] + p["bq3"]
    return -jnp.linalg.norm(dl - ql, axis=1)


if __name__ == "__main__":
    embedding_dim, latent_dim, hidden_dim = 32, 16, 32
    B = 512

    key = jax.random.PRNGKey(0)
    k_params, k_x = jax.random.split(key)
    params = init_params(k_params, embedding_dim=embedding_dim,
                         latent_dim=latent_dim, hidden_dim=hidden_dim)
    packed = pack_params(params, embedding_dim=embedding_dim,
                         hidden_dim=hidden_dim, latent_dim=latent_dim)

    # x as produced by inputs_to_tensors: concat(doc_emb, query_emb) on dim=1.
    x = jax.random.normal(k_x, (B, 2 * embedding_dim), jnp.float32)

    ref = jax.block_until_ready(_reference(x, params))

    # f32 validation path.
    out = jax.block_until_ready(
        latent_embedding_relevance(x, packed, hidden_dim=hidden_dim,
                                   latent_dim=latent_dim))
    assert out.shape == (B,)
    assert jnp.allclose(out, ref, atol=1e-4, rtol=1e-4), (out, ref)

    # Opt-in bf16 fast path (MXU-native operands, bf16 x stream in HBM);
    # validated against the f32 reference at a relaxed tolerance.
    out_bf16 = jax.block_until_ready(
        latent_embedding_relevance(x.astype(jnp.bfloat16), packed,
                                   hidden_dim=hidden_dim, latent_dim=latent_dim,
                                   use_bf16=True))
    assert out_bf16.shape == (B,)
    assert jnp.allclose(out_bf16, ref, atol=1e-1, rtol=1e-1), (out_bf16, ref)

    print("KERNEL_OK")
</pallas_src>

<mosaic_0001>
module attributes {stable_mosaic.version = 11 : i64} {
  func.func @_relevance_kernel(%arg0: i32, %arg1: memref<512x64xf32, #tpu.memory_space<vmem>>, %arg2: memref<144x72xf32, #tpu.memory_space<vmem>>, %arg3: memref<1x512xf32, #tpu.memory_space<vmem>>) attributes {dimension_semantics = [#tpu.dimension_semantics<parallel>], iteration_bounds = array<i64: 1>, scalar_prefetch = 0 : i64, scratch_operands = 0 : i64, tpu.core_type = #tpu.core_type<tc>, window_params = [{transform_indices = @transform_0, window_bounds = array<i64: 512, 64>}, {pipeline_mode = #tpu.pipeline_mode<synchronous>, transform_indices = @transform_1, window_bounds = array<i64: 144, 72>}, {transform_indices = @transform_2, window_bounds = array<i64: 1, 512>}]} {
    %c0 = arith.constant 0 : index
    %c0_0 = arith.constant 0 : index
    %0 = vector.load %arg1[%c0, %c0_0] : memref<512x64xf32, #tpu.memory_space<vmem>>, vector<512x64xf32>
    %1 = tpu.transpose %0, [1, 0] : vector<512x64xf32> -> vector<64x512xf32>
    %c0_1 = arith.constant 0 : index
    %c0_2 = arith.constant 0 : index
    %2 = vector.load %arg2[%c0_1, %c0_2] : memref<144x72xf32, #tpu.memory_space<vmem>>, vector<64x64xf32>
    %c64 = arith.constant 64 : index
    %c0_3 = arith.constant 0 : index
    %3 = vector.load %arg2[%c64, %c0_3] : memref<144x72xf32, #tpu.memory_space<vmem>>, vector<64x64xf32>
    %c128 = arith.constant 128 : index
    %c0_4 = arith.constant 0 : index
    %4 = vector.load %arg2[%c128, %c0_4] : memref<144x72xf32, #tpu.memory_space<vmem>>, vector<16x64xf32>
    %c0_5 = arith.constant 0 : index
    %c64_6 = arith.constant 64 : index
    %5 = vector.load %arg2[%c0_5, %c64_6] : memref<144x72xf32, #tpu.memory_space<vmem>>, vector<64x1xf32>
    %c0_7 = arith.constant 0 : index
    %c65 = arith.constant 65 : index
    %6 = vector.load %arg2[%c0_7, %c65] : memref<144x72xf32, #tpu.memory_space<vmem>>, vector<64x1xf32>
    %c0_8 = arith.constant 0 : index
    %c66 = arith.constant 66 : index
    %7 = vector.load %arg2[%c0_8, %c66] : memref<144x72xf32, #tpu.memory_space<vmem>>, vector<16x1xf32>
    %cst = arith.constant dense<0.000000e+00> : vector<64x512xf32>
    %8 = tpu.matmul %2, %1, %cst {dimension_numbers = #tpu.dot_dimension_numbers<[1], [0], [0], [1], [0, 0, 1, 1], [], []>} : vector<64x64xf32>, vector<64x512xf32>, vector<64x512xf32> -> vector<64x512xf32>
    %9 = vector.broadcast %5 : vector<64x1xf32> to vector<64x512xf32>
    %10 = arith.addf %8, %9 : vector<64x512xf32>
    %cst_9 = arith.constant 0.000000e+00 : f32
    %11 = vector.broadcast %cst_9 : f32 to vector<64x512xf32>
    %12 = arith.maximumf %10, %11 : vector<64x512xf32>
    %cst_10 = arith.constant dense<0.000000e+00> : vector<64x512xf32>
    %13 = tpu.matmul %3, %12, %cst_10 {dimension_numbers = #tpu.dot_dimension_numbers<[1], [0], [0], [1], [0, 0, 1, 1], [], []>} : vector<64x64xf32>, vector<64x512xf32>, vector<64x512xf32> -> vector<64x512xf32>
    %14 = vector.broadcast %6 : vector<64x1xf32> to vector<64x512xf32>
    %15 = arith.addf %13, %14 : vector<64x512xf32>
    %cst_11 = arith.constant 0.000000e+00 : f32
    %16 = vector.broadcast %cst_11 : f32 to vector<64x512xf32>
    %17 = arith.maximumf %15, %16 : vector<64x512xf32>
    %cst_12 = arith.constant dense<0.000000e+00> : vector<16x512xf32>
    %18 = tpu.matmul %4, %17, %cst_12 {dimension_numbers = #tpu.dot_dimension_numbers<[1], [0], [0], [1], [0, 0, 1, 1], [], []>} : vector<16x64xf32>, vector<64x512xf32>, vector<16x512xf32> -> vector<16x512xf32>
    %19 = vector.broadcast %7 : vector<16x1xf32> to vector<16x512xf32>
    %20 = arith.addf %18, %19 : vector<16x512xf32>
    %21 = arith.mulf %20, %20 : vector<16x512xf32>
    %cst_13 = arith.constant dense<0.000000e+00> : vector<512xf32>
    %22 = vector.multi_reduction <add>, %21, %cst_13 [0] : vector<16x512xf32> to vector<512xf32>
    %23 = vector.shape_cast %22 : vector<512xf32> to vector<1x512xf32>
    %24 = math.sqrt %23 : vector<1x512xf32>
    %cst_14 = arith.constant 0.000000e+00 : f32
    %25 = vector.broadcast %cst_14 : f32 to vector<1x512xf32>
    %26 = arith.subf %25, %24 : vector<1x512xf32>
    %c0_15 = arith.constant 0 : index
    %c0_16 = arith.constant 0 : index
    %27 = vector.load %arg3[%c0_15, %c0_16] : memref<1x512xf32, #tpu.memory_space<vmem>>, vector<1x512xf32>
    tpu.vector_store %arg3[%c0_15, %c0_16], %26 {strides = array<i32>} : memref<1x512xf32, #tpu.memory_space<vmem>>, vector<1x512xf32>,
    return
  }
  func.func @transform_0(%arg0: i32) -> (i32, i32) {
    %c0_i32 = arith.constant 0 : i32
    %c0_i32_0 = arith.constant 0 : i32
    return %arg0, %c0_i32 : i32, i32
  }
  func.func @transform_1(%arg0: i32) -> (i32, i32) {
    %c0_i32 = arith.constant 0 : i32
    %c0_i32_0 = arith.constant 0 : i32
    %c0_i32_1 = arith.constant 0 : i32
    return %c0_i32, %c0_i32_0 : i32, i32
  }
  func.func @transform_2(%arg0: i32) -> (i32, i32) {
    %c0_i32 = arith.constant 0 : i32
    %c0_i32_0 = arith.constant 0 : i32
    return %c0_i32, %arg0 : i32, i32
  }
}

</mosaic_0001>

<llo_original>
// kernel: tpu_custom_call.1
$region0: #{tpu_custom_call.1}
  #allocation0 [shape = 'u32[]', space=smem, size = 0x4, offset = 0x4, fixed_abs, tag = 'smem constant byte address 0x4 - core index']
  #allocation1 [shape = 'u32[144,128]{1,0:T(1,128)}', space=vmem, size = 0x12000, scoped, tag = 'internal scratch']
  %s0 = inlined_call_operand.vmem [shape: f32[512,64], index: 0, kind: input, shape index: {}]
  %s1 = inlined_call_operand.vmem [shape: f32[144,72], index: 1, kind: input, shape index: {}]
  %s2 = inlined_call_operand.hbm [shape: f32[1,512], index: 2, kind: output, shape index: {}]
  %s3 = sld [smem:[#allocation0]]
  $region18: #{tpu_custom_call.1} parent=0
    _
  %s5 = ssub.s32 1, %s3
  %s6 = scalar_select 0, %s5, %s3
  $region1: #{tpu_custom_call.1} parent=0
    #allocation2 [shape = 'u8[2048]{0}', space=vmem, size = 0x800, scoped, tag = 'output window, operand 0, single buffered']
    #allocation3 [shape = 's32[1]{0}', space=sflag, size = 0x4, scoped, tag = 'scoped memory for tpu_custom_call.1']
    %7 = vsyncpa [#allocation3], 0
    // Predicated region
    $region2: #{tpu_custom_call.1} parent=1 // pred_check
      _
    $region3: #{tpu_custom_call.1} parent=1 // pred_check_branch
      %9 = sbr.rel (0) target = $region5
    $region4: #{tpu_custom_call.1} parent=1 // pred_region
      _
    $region5: #{tpu_custom_call.1} parent=1 // pred_fallthru
      _
    // Predicated region
    $region6: #{tpu_custom_call.1} parent=1 // pred_check
      _
    $region7: #{tpu_custom_call.1} parent=1 // pred_check_branch
      %11 = sbr.rel (0) target = $region9
    $region8: #{tpu_custom_call.1} parent=1 // pred_region
      _
    $region9: #{tpu_custom_call.1} parent=1 // pred_fallthru
      _
    %v12 = vld [vmem:[%s0] sm:$0xff]
    %v13 = vld [vmem:[%s0 + $0x8] sm:$0xff]
    %v14 = vld [vmem:[%s0 + $0x10] sm:$0xff]
    %v15 = vld [vmem:[%s0 + $0x18] sm:$0xff]
    %v16 = vld [vmem:[%s0 + $0x20] sm:$0xff]
    %v17 = vld [vmem:[%s0 + $0x28] sm:$0xff]
    %v18 = vld [vmem:[%s0 + $0x30] sm:$0xff]
    %v19 = vld [vmem:[%s0 + $0x38] sm:$0xff]
    %v20 = vld [vmem:[%s0 + $0x40] sm:$0xff]
    %v21 = vld [vmem:[%s0 + $0x48] sm:$0xff]
    %v22 = vld [vmem:[%s0 + $0x50] sm:$0xff]
    %v23 = vld [vmem:[%s0 + $0x58] sm:$0xff]
    %v24 = vld [vmem:[%s0 + $0x60] sm:$0xff]
    %v25 = vld [vmem:[%s0 + $0x68] sm:$0xff]
    %v26 = vld [vmem:[%s0 + $0x70] sm:$0xff]
    %v27 = vld [vmem:[%s0 + $0x78] sm:$0xff]
    %v28 = vld [vmem:[%s0 + $0x80] sm:$0xff]
    %v29 = vld [vmem:[%s0 + $0x88] sm:$0xff]
    %v30 = vld [vmem:[%s0 + $0x90] sm:$0xff]
    %v31 = vld [vmem:[%s0 + $0x98] sm:$0xff]
    %v32 = vld [vmem:[%s0 + $0xa0] sm:$0xff]
    %v33 = vld [vmem:[%s0 + $0xa8] sm:$0xff]
    %v34 = vld [vmem:[%s0 + $0xb0] sm:$0xff]
    %v35 = vld [vmem:[%s0 + $0xb8] sm:$0xff]
    %v36 = vld [vmem:[%s0 + $0xc0] sm:$0xff]
    %v37 = vld [vmem:[%s0 + $0xc8] sm:$0xff]
    %v38 = vld [vmem:[%s0 + $0xd0] sm:$0xff]
    %v39 = vld [vmem:[%s0 + $0xd8] sm:$0xff]
    %v40 = vld [vmem:[%s0 + $0xe0] sm:$0xff]
    %v41 = vld [vmem:[%s0 + $0xe8] sm:$0xff]
    %v42 = vld [vmem:[%s0 + $0xf0] sm:$0xff]
    %v43 = vld [vmem:[%s0 + $0xf8] sm:$0xff]
    %v44 = vld [vmem:[%s0 + $0x100] sm:$0xff]
    %v45 = vld [vmem:[%s0 + $0x108] sm:$0xff]
    %v46 = vld [vmem:[%s0 + $0x110] sm:$0xff]
    %v47 = vld [vmem:[%s0 + $0x118] sm:$0xff]
    %v48 = vld [vmem:[%s0 + $0x120] sm:$0xff]
    %v49 = vld [vmem:[%s0 + $0x128] sm:$0xff]
    %v50 = vld [vmem:[%s0 + $0x130] sm:$0xff]
    %v51 = vld [vmem:[%s0 + $0x138] sm:$0xff]
    %v52 = vld [vmem:[%s0 + $0x140] sm:$0xff]
    %v53 = vld [vmem:[%s0 + $0x148] sm:$0xff]
    %v54 = vld [vmem:[%s0 + $0x150] sm:$0xff]
    %v55 = vld [vmem:[%s0 + $0x158] sm:$0xff]
    %v56 = vld [vmem:[%s0 + $0x160] sm:$0xff]
    %v57 = vld [vmem:[%s0 + $0x168] sm:$0xff]
    %v58 = vld [vmem:[%s0 + $0x170] sm:$0xff]
    %v59 = vld [vmem:[%s0 + $0x178] sm:$0xff]
    %v60 = vld [vmem:[%s0 + $0x180] sm:$0xff]
    %v61 = vld [vmem:[%s0 + $0x188] sm:$0xff]
    %v62 = vld [vmem:[%s0 + $0x190] sm:$0xff]
    %v63 = vld [vmem:[%s0 + $0x198] sm:$0xff]
    %v64 = vld [vmem:[%s0 + $0x1a0] sm:$0xff]
    %v65 = vld [vmem:[%s0 + $0x1a8] sm:$0xff]
    %v66 = vld [vmem:[%s0 + $0x1b0] sm:$0xff]
    %v67 = vld [vmem:[%s0 + $0x1b8] sm:$0xff]
    %v68 = vld [vmem:[%s0 + $0x1c0] sm:$0xff]
    %v69 = vld [vmem:[%s0 + $0x1c8] sm:$0xff]
    %v70 = vld [vmem:[%s0 + $0x1d0] sm:$0xff]
    %v71 = vld [vmem:[%s0 + $0x1d8] sm:$0xff]
    %v72 = vld [vmem:[%s0 + $0x1e0] sm:$0xff]
    %v73 = vld [vmem:[%s0 + $0x1e8] sm:$0xff]
    %v74 = vld [vmem:[%s0 + $0x1f0] sm:$0xff]
    %v75 = vld [vmem:[%s0 + $0x1f8] sm:$0xff]
    %v76 = vld [vmem:[%s1] sm:$0xff]
    %v77 = vld [vmem:[%s1 + $0x8] sm:$0xff]
    %v78 = vld [vmem:[%s1 + $0x10] sm:$0xff]
    %v79 = vld [vmem:[%s1 + $0x18] sm:$0xff]
    %v80 = vld [vmem:[%s1 + $0x20] sm:$0xff]
    %v81 = vld [vmem:[%s1 + $0x28] sm:$0xff]
    %v82 = vld [vmem:[%s1 + $0x30] sm:$0xff]
    %v83 = vld [vmem:[%s1 + $0x38] sm:$0xff]
    %v84 = vld [vmem:[%s1 + $0x40] sm:$0xff]
    %v85 = vld [vmem:[%s1 + $0x48] sm:$0xff]
    %v86 = vld [vmem:[%s1 + $0x50] sm:$0xff]
    %v87 = vld [vmem:[%s1 + $0x58] sm:$0xff]
    %v88 = vld [vmem:[%s1 + $0x60] sm:$0xff]
    %v89 = vld [vmem:[%s1 + $0x68] sm:$0xff]
    %v90 = vld [vmem:[%s1 + $0x70] sm:$0xff]
    %v91 = vld [vmem:[%s1 + $0x78] sm:$0xff]
    %v92 = vld [vmem:[%s1 + $0x80] sm:$0xff]
    %v93 = vld [vmem:[%s1 + $0x88] sm:$0xff]
    %95 = vset.pattern.permute.xlu0 64
    %96 = vperm.xlu0 %95, %v76
    %v97 = vpop.permute.xlu0 %96
    %100 = vset.pattern.permute.xlu0 64
    %101 = vperm.xlu0 %100, %v77
    %v102 = vpop.permute.xlu0 %101
    %105 = vset.pattern.permute.xlu0 64
    %106 = vperm.xlu0 %105, %v78
    %v107 = vpop.permute.xlu0 %106
    %110 = vset.pattern.permute.xlu0 64
    %111 = vperm.xlu0 %110, %v79
    %v112 = vpop.permute.xlu0 %111
    %115 = vset.pattern.permute.xlu0 64
    %116 = vperm.xlu0 %115, %v80
    %v117 = vpop.permute.xlu0 %116
    %120 = vset.pattern.permute.xlu0 64
    %121 = vperm.xlu0 %120, %v81
    %v122 = vpop.permute.xlu0 %121
    %125 = vset.pattern.permute.xlu0 64
    %126 = vperm.xlu0 %125, %v82
    %v127 = vpop.permute.xlu0 %126
    %130 = vset.pattern.permute.xlu0 64
    %131 = vperm.xlu0 %130, %v83
    %v132 = vpop.permute.xlu0 %131
    %vm134 = vcmask 523264
    %v135 = vsel %vm134, %v76, 0
    %v137 = vsel %vm134, %v77, 0
    %v139 = vsel %vm134, %v78, 0
    %v141 = vsel %vm134, %v79, 0
    %v143 = vsel %vm134, %v80, 0
    %v145 = vsel %vm134, %v81, 0
    %v147 = vsel %vm134, %v82, 0
    %v149 = vsel %vm134, %v83, 0
    %v152 = vsel %vm134, %v12, 0
    %v155 = vsel %vm134, %v13, 0
    %v158 = vsel %vm134, %v14, 0
    %v161 = vsel %vm134, %v15, 0
    %v164 = vsel %vm134, %v16, 0
    %v167 = vsel %vm134, %v17, 0
    %v170 = vsel %vm134, %v18, 0
    %v173 = vsel %vm134, %v19, 0
    %v176 = vsel %vm134, %v20, 0
    %v179 = vsel %vm134, %v21, 0
    %v182 = vsel %vm134, %v22, 0
    %v185 = vsel %vm134, %v23, 0
    %v188 = vsel %vm134, %v24, 0
    %v191 = vsel %vm134, %v25, 0
    %v194 = vsel %vm134, %v26, 0
    %v197 = vsel %vm134, %v27, 0
    %v200 = vsel %vm134, %v28, 0
    %v203 = vsel %vm134, %v29, 0
    %v206 = vsel %vm134, %v30, 0
    %v209 = vsel %vm134, %v31, 0
    %v212 = vsel %vm134, %v32, 0
    %v215 = vsel %vm134, %v33, 0
    %v218 = vsel %vm134, %v34, 0
    %v221 = vsel %vm134, %v35, 0
    %v224 = vsel %vm134, %v36, 0
    %v227 = vsel %vm134, %v37, 0
    %v230 = vsel %vm134, %v38, 0
    %v233 = vsel %vm134, %v39, 0
    %v236 = vsel %vm134, %v40, 0
    %v239 = vsel %vm134, %v41, 0
    %v242 = vsel %vm134, %v42, 0
    %v245 = vsel %vm134, %v43, 0
    %v248 = vsel %vm134, %v44, 0
    %v251 = vsel %vm134, %v45, 0
    %v254 = vsel %vm134, %v46, 0
    %v257 = vsel %vm134, %v47, 0
    %v260 = vsel %vm134, %v48, 0
    %v263 = vsel %vm134, %v49, 0
    %v266 = vsel %vm134, %v50, 0
    %v269 = vsel %vm134, %v51, 0
    %v272 = vsel %vm134, %v52, 0
    %v275 = vsel %vm134, %v53, 0
    %v278 = vsel %vm134, %v54, 0
    %v281 = vsel %vm134, %v55, 0
    %v284 = vsel %vm134, %v56, 0
    %v287 = vsel %vm134, %v57, 0
    %v290 = vsel %vm134, %v58, 0
    %v293 = vsel %vm134, %v59, 0
    %v296 = vsel %vm134, %v60, 0
    %v299 = vsel %vm134, %v61, 0
    %v302 = vsel %vm134, %v62, 0
    %v305 = vsel %vm134, %v63, 0
    %v308 = vsel %vm134, %v64, 0
    %v311 = vsel %vm134, %v65, 0
    %v314 = vsel %vm134, %v66, 0
    %v317 = vsel %vm134, %v67, 0
    %v320 = vsel %vm134, %v68, 0
    %v323 = vsel %vm134, %v69, 0
    %v326 = vsel %vm134, %v70, 0
    %v329 = vsel %vm134, %v71, 0
    %v332 = vsel %vm134, %v72, 0
    %v335 = vsel %vm134, %v73, 0
    %v338 = vsel %vm134, %v74, 0
    %v341 = vsel %vm134, %v75, 0
    %343 = vmatprep.subr.mxu0 0.0
    %344 = vmatpush1.xpose.msra.mxu0 %v152
    %345 = vmatprep.subr.mxu0 0.0
    %346 = vmatpush1.xpose.msra.mxu0 %v155
    %347 = vmatprep.subr.mxu0 0.0
    %348 = vmatpush1.xpose.msra.mxu0 %v158
    %349 = vmatprep.subr.mxu0 0.0
    %350 = vmatpush1.xpose.msra.mxu0 %v161
    %351 = vmatprep.subr.mxu0 0.0
    %352 = vmatpush1.xpose.msra.mxu0 %v164
    %353 = vmatprep.subr.mxu0 0.0
    %354 = vmatpush1.xpose.msra.mxu0 %v167
    %355 = vmatprep.subr.mxu0 0.0
    %356 = vmatpush1.xpose.msra.mxu0 %v170
    %357 = vmatprep.subr.mxu0 0.0
    %358 = vmatpush1.xpose.msra.mxu0 %v173
    %359 = vmatprep.subr.mxu0 0.0
    %360 = vmatpush1.xpose.msra.mxu0 %v176
    %361 = vmatprep.subr.mxu0 0.0
    %362 = vmatpush1.xpose.msra.mxu0 %v179
    %363 = vmatprep.subr.mxu0 0.0
    %364 = vmatpush1.xpose.msra.mxu0 %v182
    %365 = vmatprep.subr.mxu0 0.0
    %366 = vmatpush1.xpose.msra.mxu0 %v185
    %367 = vmatprep.subr.mxu0 0.0
    %368 = vmatpush1.xpose.msra.mxu0 %v188
    %369 = vmatprep.subr.mxu0 0.0
    %370 = vmatpush1.xpose.msra.mxu0 %v191
    %371 = vmatprep.subr.mxu0 0.0
    %372 = vmatpush1.xpose.msra.mxu0 %v194
    %373 = vmatprep.subr.mxu0 0.0
    %374 = vmatpush1.xpose.msra.mxu0 %v197
    %375 = vmatprep.subr.mxu0 0.0
    %376 = vmatpush1.xpose.msra.mxu0 %v200
    %377 = vmatprep.subr.mxu0 0.0
    %378 = vmatpush1.xpose.msra.mxu0 %v203
    %379 = vmatprep.subr.mxu0 0.0
    %380 = vmatpush1.xpose.msra.mxu0 %v206
    %381 = vmatprep.subr.mxu0 0.0
    %382 = vmatpush1.xpose.msra.mxu0 %v209
    %383 = vmatprep.subr.mxu0 0.0
    %384 = vmatpush1.xpose.msra.mxu0 %v212
    %385 = vmatprep.subr.mxu0 0.0
    %386 = vmatpush1.xpose.msra.mxu0 %v215
    %387 = vmatprep.subr.mxu0 0.0
    %388 = vmatpush1.xpose.msra.mxu0 %v218
    %389 = vmatprep.subr.mxu0 0.0
    %390 = vmatpush1.xpose.msra.mxu0 %v221
    %391 = vmatprep.subr.mxu0 0.0
    %392 = vmatpush1.xpose.msra.mxu0 %v224
    %393 = vmatprep.subr.mxu0 0.0
    %394 = vmatpush1.xpose.msra.mxu0 %v227
    %395 = vmatprep.subr.mxu0 0.0
    %396 = vmatpush1.xpose.msra.mxu0 %v230
    %397 = vmatprep.subr.mxu0 0.0
    %398 = vmatpush1.xpose.msra.mxu0 %v233
    %399 = vmatprep.subr.mxu0 0.0
    %400 = vmatpush1.xpose.msra.mxu0 %v236
    %401 = vmatprep.subr.mxu0 0.0
    %402 = vmatpush1.xpose.msra.mxu0 %v239
    %403 = vmatprep.subr.mxu0 0.0
    %404 = vmatpush1.xpose.msra.mxu0 %v242
    %405 = vmatprep.subr.mxu0 0.0
    %406 = vmatpush1.xpose.msra.mxu0 %v245
    %407 = vmatprep.mubr.f32.mxu0 0.0
    %408 = vmatmul.mubr.f32.gmra.mrb[0].mxu0 %v135
    %v409 = vpop.f32.mrb[0].mxu0
    %v410 = vadd.f32 %v97, %v409
    %v411 = vpop.f32.mrb[0].mxu0
    %v412 = vadd.f32 %v97, %v411
    %413 = vmatprep.mubr.f32.mxu0 0.0
    %414 = vmatmul.mubr.f32.gmra.mrb[0].mxu0 %v137
    %v415 = vpop.f32.mrb[0].mxu0
    %v416 = vadd.f32 %v102, %v415
    %v417 = vpop.f32.mrb[0].mxu0
    %v418 = vadd.f32 %v102, %v417
    %419 = vmatprep.mubr.f32.mxu0 0.0
    %420 = vmatmul.mubr.f32.gmra.mrb[0].mxu0 %v139
    %v421 = vpop.f32.mrb[0].mxu0
    %v422 = vadd.f32 %v107, %v421
    %v423 = vpop.f32.mrb[0].mxu0
    %v424 = vadd.f32 %v107, %v423
    %425 = vmatprep.mubr.f32.mxu0 0.0
    %426 = vmatmul.mubr.f32.gmra.mrb[0].mxu0 %v141
    %v427 = vpop.f32.mrb[0].mxu0
    %v428 = vadd.f32 %v112, %v427
    %v429 = vpop.f32.mrb[0].mxu0
    %v430 = vadd.f32 %v112, %v429
    %431 = vmatprep.mubr.f32.mxu0 0.0
    %432 = vmatmul.mubr.f32.gmra.mrb[0].mxu0 %v143
    %v433 = vpop.f32.mrb[0].mxu0
    %v434 = vadd.f32 %v117, %v433
    %v435 = vpop.f32.mrb[0].mxu0
    %v436 = vadd.f32 %v117, %v435
    %437 = vmatprep.mubr.f32.mxu0 0.0
    %438 = vmatmul.mubr.f32.gmra.mrb[0].mxu0 %v145
    %v439 = vpop.f32.mrb[0].mxu0
    %v440 = vadd.f32 %v122, %v439
    %v441 = vpop.f32.mrb[0].mxu0
    %v442 = vadd.f32 %v122, %v441
    %443 = vmatprep.mubr.f32.mxu0 0.0
    %444 = vmatmul.mubr.f32.gmra.mrb[0].mxu0 %v147
    %v445 = vpop.f32.mrb[0].mxu0
    %v446 = vadd.f32 %v127, %v445
    %v447 = vpop.f32.mrb[0].mxu0
    %v448 = vadd.f32 %v127, %v447
    %449 = vmatprep.mubr.f32.mxu0 0.0
    %450 = vmatmul.mubr.f32.gmra.mrb[0].mxu0 %v149
    %v451 = vpop.f32.mrb[0].mxu0
    %v452 = vadd.f32 %v132, %v451
    %v453 = vpop.f32.mrb[0].mxu0
    %v454 = vadd.f32 %v132, %v453
    %455 = vdwg.mxu0
    %456 = vmatprep.subr.mxu0 0.0
    %457 = vmatpush1.xpose.msra.mxu0 %v248
    %458 = vmatprep.subr.mxu0 0.0
    %459 = vmatpush1.xpose.msra.mxu0 %v251
    %460 = vmatprep.subr.mxu0 0.0
    %461 = vmatpush1.xpose.msra.mxu0 %v254
    %462 = vmatprep.subr.mxu0 0.0
    %463 = vmatpush1.xpose.msra.mxu0 %v257
    %464 = vmatprep.subr.mxu0 0.0
    %465 = vmatpush1.xpose.msra.mxu0 %v260
    %466 = vmatprep.subr.mxu0 0.0
    %467 = vmatpush1.xpose.msra.mxu0 %v263
    %468 = vmatprep.subr.mxu0 0.0
    %469 = vmatpush1.xpose.msra.mxu0 %v266
    %470 = vmatprep.subr.mxu0 0.0
    %471 = vmatpush1.xpose.msra.mxu0 %v269
    %472 = vmatprep.subr.mxu0 0.0
    %473 = vmatpush1.xpose.msra.mxu0 %v272
    %474 = vmatprep.subr.mxu0 0.0
    %475 = vmatpush1.xpose.msra.mxu0 %v275
    %476 = vmatprep.subr.mxu0 0.0
    %477 = vmatpush1.xpose.msra.mxu0 %v278
    %478 = vmatprep.subr.mxu0 0.0
    %479 = vmatpush1.xpose.msra.mxu0 %v281
    %480 = vmatprep.subr.mxu0 0.0
    %481 = vmatpush1.xpose.msra.mxu0 %v284
    %482 = vmatprep.subr.mxu0 0.0
    %483 = vmatpush1.xpose.msra.mxu0 %v287
    %484 = vmatprep.subr.mxu0 0.0
    %485 = vmatpush1.xpose.msra.mxu0 %v290
    %486 = vmatprep.subr.mxu0 0.0
    %487 = vmatpush1.xpose.msra.mxu0 %v293
    %488 = vmatprep.subr.mxu0 0.0
    %489 = vmatpush1.xpose.msra.mxu0 %v296
    %490 = vmatprep.subr.mxu0 0.0
    %491 = vmatpush1.xpose.msra.mxu0 %v299
    %492 = vmatprep.subr.mxu0 0.0
    %493 = vmatpush1.xpose.msra.mxu0 %v302
    %494 = vmatprep.subr.mxu0 0.0
    %495 = vmatpush1.xpose.msra.mxu0 %v305
    %496 = vmatprep.subr.mxu0 0.0
    %497 = vmatpush1.xpose.msra.mxu0 %v308
    %498 = vmatprep.subr.mxu0 0.0
    %499 = vmatpush1.xpose.msra.mxu0 %v311
    %500 = vmatprep.subr.mxu0 0.0
    %501 = vmatpush1.xpose.msra.mxu0 %v314
    %502 = vmatprep.subr.mxu0 0.0
    %503 = vmatpush1.xpose.msra.mxu0 %v317
    %504 = vmatprep.subr.mxu0 0.0
    %505 = vmatpush1.xpose.msra.mxu0 %v320
    %506 = vmatprep.subr.mxu0 0.0
    %507 = vmatpush1.xpose.msra.mxu0 %v323
    %508 = vmatprep.subr.mxu0 0.0
    %509 = vmatpush1.xpose.msra.mxu0 %v326
    %510 = vmatprep.subr.mxu0 0.0
    %511 = vmatpush1.xpose.msra.mxu0 %v329
    %512 = vmatprep.subr.mxu0 0.0
    %513 = vmatpush1.xpose.msra.mxu0 %v332
    %514 = vmatprep.subr.mxu0 0.0
    %515 = vmatpush1.xpose.msra.mxu0 %v335
    %516 = vmatprep.subr.mxu0 0.0
    %517 = vmatpush1.xpose.msra.mxu0 %v338
    %518 = vmatprep.subr.mxu0 0.0
    %519 = vmatpush1.xpose.msra.mxu0 %v341
    %520 = vmatprep.mubr.f32.mxu0 0.0
    %521 = vmatmul.mubr.f32.gmra.mrb[0].mxu0 %v135
    %v522 = vpop.f32.mrb[0].mxu0
    %v523 = vadd.f32 %v97, %v522
    %v524 = vpop.f32.mrb[0].mxu0
    %v525 = vadd.f32 %v97, %v524
    %526 = vmatprep.mubr.f32.mxu0 0.0
    %527 = vmatmul.mubr.f32.gmra.mrb[0].mxu0 %v137
    %v528 = vpop.f32.mrb[0].mxu0
    %v529 = vadd.f32 %v102, %v528
    %v530 = vpop.f32.mrb[0].mxu0
    %v531 = vadd.f32 %v102, %v530
    %532 = vmatprep.mubr.f32.mxu0 0.0
    %533 = vmatmul.mubr.f32.gmra.mrb[0].mxu0 %v139
    %v534 = vpop.f32.mrb[0].mxu0
    %v535 = vadd.f32 %v107, %v534
    %v536 = vpop.f32.mrb[0].mxu0
    %v537 = vadd.f32 %v107, %v536
    %538 = vmatprep.mubr.f32.mxu0 0.0
    %539 = vmatmul.mubr.f32.gmra.mrb[0].mxu0 %v141
    %v540 = vpop.f32.mrb[0].mxu0
    %v541 = vadd.f32 %v112, %v540
    %v542 = vpop.f32.mrb[0].mxu0
    %v543 = vadd.f32 %v112, %v542
    %544 = vmatprep.mubr.f32.mxu0 0.0
    %545 = vmatmul.mubr.f32.gmra.mrb[0].mxu0 %v143
    %v546 = vpop.f32.mrb[0].mxu0
    %v547 = vadd.f32 %v117, %v546
    %v548 = vpop.f32.mrb[0].mxu0
    %v549 = vadd.f32 %v117, %v548
    %550 = vmatprep.mubr.f32.mxu0 0.0
    %551 = vmatmul.mubr.f32.gmra.mrb[0].mxu0 %v145
    %v552 = vpop.f32.mrb[0].mxu0
    %v553 = vadd.f32 %v122, %v552
    %v554 = vpop.f32.mrb[0].mxu0
    %v555 = vadd.f32 %v122, %v554
    %556 = vmatprep.mubr.f32.mxu0 0.0
    %557 = vmatmul.mubr.f32.gmra.mrb[0].mxu0 %v147
    %v558 = vpop.f32.mrb[0].mxu0
    %v559 = vadd.f32 %v127, %v558
    %v560 = vpop.f32.mrb[0].mxu0
    %v561 = vadd.f32 %v127, %v560
    %562 = vmatprep.mubr.f32.mxu0 0.0
    %563 = vmatmul.mubr.f32.gmra.mrb[0].mxu0 %v149
    %v564 = vpop.f32.mrb[0].mxu0
    %v565 = vadd.f32 %v132, %v564
    %v566 = vpop.f32.mrb[0].mxu0
    %v567 = vadd.f32 %v132, %v566
    %568 = vdwg.mxu0
    %v569 = vmax.f32 %v410, 0.0
    %v570 = vmax.f32 %v412, 0.0
    %v571 = vmax.f32 %v523, 0.0
    %v572 = vmax.f32 %v525, 0.0
    %v573 = vmax.f32 %v416, 0.0
    %v574 = vmax.f32 %v418, 0.0
    %v575 = vmax.f32 %v529, 0.0
    %v576 = vmax.f32 %v531, 0.0
    %v577 = vmax.f32 %v422, 0.0
    %v578 = vmax.f32 %v424, 0.0
    %v579 = vmax.f32 %v535, 0.0
    %v580 = vmax.f32 %v537, 0.0
    %v581 = vmax.f32 %v428, 0.0
    %v582 = vmax.f32 %v430, 0.0
    %v583 = vmax.f32 %v541, 0.0
    %v584 = vmax.f32 %v543, 0.0
    %v585 = vmax.f32 %v434, 0.0
    %v586 = vmax.f32 %v436, 0.0
    %v587 = vmax.f32 %v547, 0.0
    %v588 = vmax.f32 %v549, 0.0
    %v589 = vmax.f32 %v440, 0.0
    %v590 = vmax.f32 %v442, 0.0
    %v591 = vmax.f32 %v553, 0.0
    %v592 = vmax.f32 %v555, 0.0
    %v593 = vmax.f32 %v446, 0.0
    %v594 = vmax.f32 %v448, 0.0
    %v595 = vmax.f32 %v559, 0.0
    %v596 = vmax.f32 %v561, 0.0
    %v597 = vmax.f32 %v452, 0.0
    %v598 = vmax.f32 %v454, 0.0
    %v599 = vmax.f32 %v565, 0.0
    %v600 = vmax.f32 %v567, 0.0
    %601 = vset.pattern.permute.xlu0 65
    %602 = vperm.xlu0 %601, %v76
    %v603 = vpop.permute.xlu0 %602
    %605 = vset.pattern.permute.xlu0 65
    %606 = vperm.xlu0 %605, %v77
    %v607 = vpop.permute.xlu0 %606
    %609 = vset.pattern.permute.xlu0 65
    %610 = vperm.xlu0 %609, %v78
    %v611 = vpop.permute.xlu0 %610
    %613 = vset.pattern.permute.xlu0 65
    %614 = vperm.xlu0 %613, %v79
    %v615 = vpop.permute.xlu0 %614
    %617 = vset.pattern.permute.xlu0 65
    %618 = vperm.xlu0 %617, %v80
    %v619 = vpop.permute.xlu0 %618
    %621 = vset.pattern.permute.xlu0 65
    %622 = vperm.xlu0 %621, %v81
    %v623 = vpop.permute.xlu0 %622
    %625 = vset.pattern.permute.xlu0 65
    %626 = vperm.xlu0 %625, %v82
    %v627 = vpop.permute.xlu0 %626
    %629 = vset.pattern.permute.xlu0 65
    %630 = vperm.xlu0 %629, %v83
    %v631 = vpop.permute.xlu0 %630
    %v634 = vsel %vm134, %v84, 0
    %v637 = vsel %vm134, %v85, 0
    %v640 = vsel %vm134, %v86, 0
    %v643 = vsel %vm134, %v87, 0
    %v646 = vsel %vm134, %v88, 0
    %v649 = vsel %vm134, %v89, 0
    %v652 = vsel %vm134, %v90, 0
    %v655 = vsel %vm134, %v91, 0
    %657 = vmatprep.subr.mxu0 %v570
    %658 = vmatpush1.msra.mxu0 %v569
    %659 = vmatprep.subr.mxu0 %v574
    %660 = vmatpush1.msra.mxu0 %v573
    %661 = vmatprep.subr.mxu0 %v578
    %662 = vmatpush1.msra.mxu0 %v577
    %663 = vmatprep.subr.mxu0 %v582
    %664 = vmatpush1.msra.mxu0 %v581
    %665 = vmatprep.subr.mxu0 %v586
    %666 = vmatpush1.msra.mxu0 %v585
    %667 = vmatprep.subr.mxu0 %v590
    %668 = vmatpush1.msra.mxu0 %v589
    %669 = vmatprep.subr.mxu0 %v594
    %670 = vmatpush1.msra.mxu0 %v593
    %671 = vmatprep.subr.mxu0 %v598
    %672 = vmatpush1.msra.mxu0 %v597
    %673 = vmatprep.subr.mxu0 0.0
    %674 = vmatpush1.msra.mxu0 0.0
    %675 = vmatprep.subr.mxu0 0.0
    %676 = vmatpush1.msra.mxu0 0.0
    %677 = vmatprep.subr.mxu0 0.0
    %678 = vmatpush1.msra.mxu0 0.0
    %679 = vmatprep.subr.mxu0 0.0
    %680 = vmatpush1.msra.mxu0 0.0
    %681 = vmatprep.subr.mxu0 0.0
    %682 = vmatpush1.msra.mxu0 0.0
    %683 = vmatprep.subr.mxu0 0.0
    %684 = vmatpush1.msra.mxu0 0.0
    %685 = vmatprep.subr.mxu0 0.0
    %686 = vmatpush1.msra.mxu0 0.0
    %687 = vmatprep.subr.mxu0 0.0
    %688 = vmatpush1.msra.mxu0 0.0
    %689 = vmatprep.subr.mxu0 0.0
    %690 = vmatpush1.msra.mxu0 0.0
    %691 = vmatprep.subr.mxu0 0.0
    %692 = vmatpush1.msra.mxu0 0.0
    %693 = vmatprep.subr.mxu0 0.0
    %694 = vmatpush1.msra.mxu0 0.0
    %695 = vmatprep.subr.mxu0 0.0
    %696 = vmatpush1.msra.mxu0 0.0
    %697 = vmatprep.subr.mxu0 0.0
    %698 = vmatpush1.msra.mxu0 0.0
    %699 = vmatprep.subr.mxu0 0.0
    %700 = vmatpush1.msra.mxu0 0.0
    %701 = vmatprep.subr.mxu0 0.0
    %702 = vmatpush1.msra.mxu0 0.0
    %703 = vmatprep.subr.mxu0 0.0
    %704 = vmatpush1.msra.mxu0 0.0
    %705 = vmatprep.subr.mxu0 0.0
    %706 = vmatpush1.msra.mxu0 0.0
    %707 = vmatprep.subr.mxu0 0.0
    %708 = vmatpush1.msra.mxu0 0.0
    %709 = vmatprep.subr.mxu0 0.0
    %710 = vmatpush1.msra.mxu0 0.0
    %711 = vmatprep.subr.mxu0 0.0
    %712 = vmatpush1.msra.mxu0 0.0
    %713 = vmatprep.subr.mxu0 0.0
    %714 = vmatpush1.msra.mxu0 0.0
    %715 = vmatprep.subr.mxu0 0.0
    %716 = vmatpush1.msra.mxu0 0.0
    %717 = vmatprep.subr.mxu0 0.0
    %718 = vmatpush1.msra.mxu0 0.0
    %719 = vmatprep.subr.mxu0 0.0
    %720 = vmatpush1.msra.mxu0 0.0
    %721 = vmatprep.mubr.f32.mxu0 0.0
    %722 = vmatmul.mubr.f32.gmra.mrb[0].mxu0 %v634
    %v723 = vpop.f32.mrb[0].mxu0
    %v724 = vadd.f32 %v603, %v723
    %v725 = vpop.f32.mrb[0].mxu0
    %v726 = vadd.f32 %v603, %v725
    %727 = vmatprep.mubr.f32.mxu0 0.0
    %728 = vmatmul.mubr.f32.gmra.mrb[0].mxu0 %v637
    %v729 = vpop.f32.mrb[0].mxu0
    %v730 = vadd.f32 %v607, %v729
    %v731 = vpop.f32.mrb[0].mxu0
    %v732 = vadd.f32 %v607, %v731
    %733 = vmatprep.mubr.f32.mxu0 0.0
    %734 = vmatmul.mubr.f32.gmra.mrb[0].mxu0 %v640
    %v735 = vpop.f32.mrb[0].mxu0
    %v736 = vadd.f32 %v611, %v735
    %v737 = vpop.f32.mrb[0].mxu0
    %v738 = vadd.f32 %v611, %v737
    %739 = vmatprep.mubr.f32.mxu0 0.0
    %740 = vmatmul.mubr.f32.gmra.mrb[0].mxu0 %v643
    %v741 = vpop.f32.mrb[0].mxu0
    %v742 = vadd.f32 %v615, %v741
    %v743 = vpop.f32.mrb[0].mxu0
    %v744 = vadd.f32 %v615, %v743
    %745 = vmatprep.mubr.f32.mxu0 0.0
    %746 = vmatmul.mubr.f32.gmra.mrb[0].mxu0 %v646
    %v747 = vpop.f32.mrb[0].mxu0
    %v748 = vadd.f32 %v619, %v747
    %v749 = vpop.f32.mrb[0].mxu0
    %v750 = vadd.f32 %v619, %v749
    %751 = vmatprep.mubr.f32.mxu0 0.0
    %752 = vmatmul.mubr.f32.gmra.mrb[0].mxu0 %v649
    %v753 = vpop.f32.mrb[0].mxu0
    %v754 = vadd.f32 %v623, %v753
    %v755 = vpop.f32.mrb[0].mxu0
    %v756 = vadd.f32 %v623, %v755
    %757 = vmatprep.mubr.f32.mxu0 0.0
    %758 = vmatmul.mubr.f32.gmra.mrb[0].mxu0 %v652
    %v759 = vpop.f32.mrb[0].mxu0
    %v760 = vadd.f32 %v627, %v759
    %v761 = vpop.f32.mrb[0].mxu0
    %v762 = vadd.f32 %v627, %v761
    %763 = vmatprep.mubr.f32.mxu0 0.0
    %764 = vmatmul.mubr.f32.gmra.mrb[0].mxu0 %v655
    %v765 = vpop.f32.mrb[0].mxu0
    %v766 = vadd.f32 %v631, %v765
    %v767 = vpop.f32.mrb[0].mxu0
    %v768 = vadd.f32 %v631, %v767
    %769 = vdwg.mxu0
    %770 = vmatprep.subr.mxu0 %v572
    %771 = vmatpush1.msra.mxu0 %v571
    %772 = vmatprep.subr.mxu0 %v576
    %773 = vmatpush1.msra.mxu0 %v575
    %774 = vmatprep.subr.mxu0 %v580
    %775 = vmatpush1.msra.mxu0 %v579
    %776 = vmatprep.subr.mxu0 %v584
    %777 = vmatpush1.msra.mxu0 %v583
    %778 = vmatprep.subr.mxu0 %v588
    %779 = vmatpush1.msra.mxu0 %v587
    %780 = vmatprep.subr.mxu0 %v592
    %781 = vmatpush1.msra.mxu0 %v591
    %782 = vmatprep.subr.mxu0 %v596
    %783 = vmatpush1.msra.mxu0 %v595
    %784 = vmatprep.subr.mxu0 %v600
    %785 = vmatpush1.msra.mxu0 %v599
    %786 = vmatprep.subr.mxu0 0.0
    %787 = vmatpush1.msra.mxu0 0.0
    %788 = vmatprep.subr.mxu0 0.0
    %789 = vmatpush1.msra.mxu0 0.0
    %790 = vmatprep.subr.mxu0 0.0
    %791 = vmatpush1.msra.mxu0 0.0
    %792 = vmatprep.subr.mxu0 0.0
    %793 = vmatpush1.msra.mxu0 0.0
    %794 = vmatprep.subr.mxu0 0.0
    %795 = vmatpush1.msra.mxu0 0.0
    %796 = vmatprep.subr.mxu0 0.0
    %797 = vmatpush1.msra.mxu0 0.0
    %798 = vmatprep.subr.mxu0 0.0
    %799 = vmatpush1.msra.mxu0 0.0
    %800 = vmatprep.subr.mxu0 0.0
    %801 = vmatpush1.msra.mxu0 0.0
    %802 = vmatprep.subr.mxu0 0.0
    %803 = vmatpush1.msra.mxu0 0.0
    %804 = vmatprep.subr.mxu0 0.0
    %805 = vmatpush1.msra.mxu0 0.0
    %806 = vmatprep.subr.mxu0 0.0
    %807 = vmatpush1.msra.mxu0 0.0
    %808 = vmatprep.subr.mxu0 0.0
    %809 = vmatpush1.msra.mxu0 0.0
    %810 = vmatprep.subr.mxu0 0.0
    %811 = vmatpush1.msra.mxu0 0.0
    %812 = vmatprep.subr.mxu0 0.0
    %813 = vmatpush1.msra.mxu0 0.0
    %814 = vmatprep.subr.mxu0 0.0
    %815 = vmatpush1.msra.mxu0 0.0
    %816 = vmatprep.subr.mxu0 0.0
    %817 = vmatpush1.msra.mxu0 0.0
    %818 = vmatprep.subr.mxu0 0.0
    %819 = vmatpush1.msra.mxu0 0.0
    %820 = vmatprep.subr.mxu0 0.0
    %821 = vmatpush1.msra.mxu0 0.0
    %822 = vmatprep.subr.mxu0 0.0
    %823 = vmatpush1.msra.mxu0 0.0
    %824 = vmatprep.subr.mxu0 0.0
    %825 = vmatpush1.msra.mxu0 0.0
    %826 = vmatprep.subr.mxu0 0.0
    %827 = vmatpush1.msra.mxu0 0.0
    %828 = vmatprep.subr.mxu0 0.0
    %829 = vmatpush1.msra.mxu0 0.0
    %830 = vmatprep.subr.mxu0 0.0
    %831 = vmatpush1.msra.mxu0 0.0
    %832 = vmatprep.subr.mxu0 0.0
    %833 = vmatpush1.msra.mxu0 0.0
    %834 = vmatprep.mubr.f32.mxu0 0.0
    %835 = vmatmul.mubr.f32.gmra.mrb[0].mxu0 %v634
    %v836 = vpop.f32.mrb[0].mxu0
    %v837 = vadd.f32 %v603, %v836
    %v838 = vpop.f32.mrb[0].mxu0
    %v839 = vadd.f32 %v603, %v838
    %840 = vmatprep.mubr.f32.mxu0 0.0
    %841 = vmatmul.mubr.f32.gmra.mrb[0].mxu0 %v637
    %v842 = vpop.f32.mrb[0].mxu0
    %v843 = vadd.f32 %v607, %v842
    %v844 = vpop.f32.mrb[0].mxu0
    %v845 = vadd.f32 %v607, %v844
    %846 = vmatprep.mubr.f32.mxu0 0.0
    %847 = vmatmul.mubr.f32.gmra.mrb[0].mxu0 %v640
    %v848 = vpop.f32.mrb[0].mxu0
    %v849 = vadd.f32 %v611, %v848
    %v850 = vpop.f32.mrb[0].mxu0
    %v851 = vadd.f32 %v611, %v850
    %852 = vmatprep.mubr.f32.mxu0 0.0
    %853 = vmatmul.mubr.f32.gmra.mrb[0].mxu0 %v643
    %v854 = vpop.f32.mrb[0].mxu0
    %v855 = vadd.f32 %v615, %v854
    %v856 = vpop.f32.mrb[0].mxu0
    %v857 = vadd.f32 %v615, %v856
    %858 = vmatprep.mubr.f32.mxu0 0.0
    %859 = vmatmul.mubr.f32.gmra.mrb[0].mxu0 %v646
    %v860 = vpop.f32.mrb[0].mxu0
    %v861 = vadd.f32 %v619, %v860
    %v862 = vpop.f32.mrb[0].mxu0
    %v863 = vadd.f32 %v619, %v862
    %864 = vmatprep.mubr.f32.mxu0 0.0
    %865 = vmatmul.mubr.f32.gmra.mrb[0].mxu0 %v649
    %v866 = vpop.f32.mrb[0].mxu0
    %v867 = vadd.f32 %v623, %v866
    %v868 = vpop.f32.mrb[0].mxu0
    %v869 = vadd.f32 %v623, %v868
    %870 = vmatprep.mubr.f32.mxu0 0.0
    %871 = vmatmul.mubr.f32.gmra.mrb[0].mxu0 %v652
    %v872 = vpop.f32.mrb[0].mxu0
    %v873 = vadd.f32 %v627, %v872
    %v874 = vpop.f32.mrb[0].mxu0
    %v875 = vadd.f32 %v627, %v874
    %876 = vmatprep.mubr.f32.mxu0 0.0
    %877 = vmatmul.mubr.f32.gmra.mrb[0].mxu0 %v655
    %v878 = vpop.f32.mrb[0].mxu0
    %v879 = vadd.f32 %v631, %v878
    %v880 = vpop.f32.mrb[0].mxu0
    %v881 = vadd.f32 %v631, %v880
    %882 = vdwg.mxu0
    %v883 = vmax.f32 %v724, 0.0
    %v884 = vmax.f32 %v726, 0.0
    %v885 = vmax.f32 %v837, 0.0
    %v886 = vmax.f32 %v839, 0.0
    %v887 = vmax.f32 %v730, 0.0
    %v888 = vmax.f32 %v732, 0.0
    %v889 = vmax.f32 %v843, 0.0
    %v890 = vmax.f32 %v845, 0.0
    %v891 = vmax.f32 %v736, 0.0
    %v892 = vmax.f32 %v738, 0.0
    %v893 = vmax.f32 %v849, 0.0
    %v894 = vmax.f32 %v851, 0.0
    %v895 = vmax.f32 %v742, 0.0
    %v896 = vmax.f32 %v744, 0.0
    %v897 = vmax.f32 %v855, 0.0
    %v898 = vmax.f32 %v857, 0.0
    %v899 = vmax.f32 %v748, 0.0
    %v900 = vmax.f32 %v750, 0.0
    %v901 = vmax.f32 %v861, 0.0
    %v902 = vmax.f32 %v863, 0.0
    %v903 = vmax.f32 %v754, 0.0
    %v904 = vmax.f32 %v756, 0.0
    %v905 = vmax.f32 %v867, 0.0
    %v906 = vmax.f32 %v869, 0.0
    %v907 = vmax.f32 %v760, 0.0
    %v908 = vmax.f32 %v762, 0.0
    %v909 = vmax.f32 %v873, 0.0
    %v910 = vmax.f32 %v875, 0.0
    %v911 = vmax.f32 %v766, 0.0
    %v912 = vmax.f32 %v768, 0.0
    %v913 = vmax.f32 %v879, 0.0
    %v914 = vmax.f32 %v881, 0.0
    %915 = vset.pattern.permute.xlu0 66
    %916 = vperm.xlu0 %915, %v76
    %v917 = vpop.permute.xlu0 %916
    %919 = vset.pattern.permute.xlu0 66
    %920 = vperm.xlu0 %919, %v77
    %v921 = vpop.permute.xlu0 %920
    %v924 = vsel %vm134, %v92, 0
    %v927 = vsel %vm134, %v93, 0
    %929 = vmatprep.subr.mxu0 %v884
    %930 = vmatpush1.msra.mxu0 %v883
    %931 = vmatprep.subr.mxu0 %v888
    %932 = vmatpush1.msra.mxu0 %v887
    %933 = vmatprep.subr.mxu0 %v892
    %934 = vmatpush1.msra.mxu0 %v891
    %935 = vmatprep.subr.mxu0 %v896
    %936 = vmatpush1.msra.mxu0 %v895
    %937 = vmatprep.subr.mxu0 %v900
    %938 = vmatpush1.msra.mxu0 %v899
    %939 = vmatprep.subr.mxu0 %v904
    %940 = vmatpush1.msra.mxu0 %v903
    %941 = vmatprep.subr.mxu0 %v908
    %942 = vmatpush1.msra.mxu0 %v907
    %943 = vmatprep.subr.mxu0 %v912
    %944 = vmatpush1.msra.mxu0 %v911
    %945 = vmatprep.subr.mxu0 0.0
    %946 = vmatpush1.msra.mxu0 0.0
    %947 = vmatprep.subr.mxu0 0.0
    %948 = vmatpush1.msra.mxu0 0.0
    %949 = vmatprep.subr.mxu0 0.0
    %950 = vmatpush1.msra.mxu0 0.0
    %951 = vmatprep.subr.mxu0 0.0
    %952 = vmatpush1.msra.mxu0 0.0
    %953 = vmatprep.subr.mxu0 0.0
    %954 = vmatpush1.msra.mxu0 0.0
    %955 = vmatprep.subr.mxu0 0.0
    %956 = vmatpush1.msra.mxu0 0.0
    %957 = vmatprep.subr.mxu0 0.0
    %958 = vmatpush1.msra.mxu0 0.0
    %959 = vmatprep.subr.mxu0 0.0
    %960 = vmatpush1.msra.mxu0 0.0
    %961 = vmatprep.subr.mxu0 0.0
    %962 = vmatpush1.msra.mxu0 0.0
    %963 = vmatprep.subr.mxu0 0.0
    %964 = vmatpush1.msra.mxu0 0.0
    %965 = vmatprep.subr.mxu0 0.0
    %966 = vmatpush1.msra.mxu0 0.0
    %967 = vmatprep.subr.mxu0 0.0
    %968 = vmatpush1.msra.mxu0 0.0
    %969 = vmatprep.subr.mxu0 0.0
    %970 = vmatpush1.msra.mxu0 0.0
    %971 = vmatprep.subr.mxu0 0.0
    %972 = vmatpush1.msra.mxu0 0.0
    %973 = vmatprep.subr.mxu0 0.0
    %974 = vmatpush1.msra.mxu0 0.0
    %975 = vmatprep.subr.mxu0 0.0
    %976 = vmatpush1.msra.mxu0 0.0
    %977 = vmatprep.subr.mxu0 0.0
    %978 = vmatpush1.msra.mxu0 0.0
    %979 = vmatprep.subr.mxu0 0.0
    %980 = vmatpush1.msra.mxu0 0.0
    %981 = vmatprep.subr.mxu0 0.0
    %982 = vmatpush1.msra.mxu0 0.0
    %983 = vmatprep.subr.mxu0 0.0
    %984 = vmatpush1.msra.mxu0 0.0
    %985 = vmatprep.subr.mxu0 0.0
    %986 = vmatpush1.msra.mxu0 0.0
    %987 = vmatprep.subr.mxu0 0.0
    %988 = vmatpush1.msra.mxu0 0.0
    %989 = vmatprep.subr.mxu0 0.0
    %990 = vmatpush1.msra.mxu0 0.0
    %991 = vmatprep.subr.mxu0 0.0
    %992 = vmatpush1.msra.mxu0 0.0
    %993 = vmatprep.mubr.f32.mxu0 0.0
    %994 = vmatmul.mubr.f32.gmra.mrb[0].mxu0 %v924
    %v995 = vpop.f32.mrb[0].mxu0
    %v996 = vadd.f32 %v917, %v995
    %v997 = vpop.f32.mrb[0].mxu0
    %v998 = vadd.f32 %v917, %v997
    %999 = vmatprep.mubr.f32.mxu0 0.0
    %1000 = vmatmul.mubr.f32.gmra.mrb[0].mxu0 %v927
    %v1001 = vpop.f32.mrb[0].mxu0
    %v1002 = vadd.f32 %v921, %v1001
    %v1003 = vpop.f32.mrb[0].mxu0
    %v1004 = vadd.f32 %v921, %v1003
    %1005 = vdwg.mxu0
    %1006 = vmatprep.subr.mxu0 %v886
    %1007 = vmatpush1.msra.mxu0 %v885
    %1008 = vmatprep.subr.mxu0 %v890
    %1009 = vmatpush1.msra.mxu0 %v889
    %1010 = vmatprep.subr.mxu0 %v894
    %1011 = vmatpush1.msra.mxu0 %v893
    %1012 = vmatprep.subr.mxu0 %v898
    %1013 = vmatpush1.msra.mxu0 %v897
    %1014 = vmatprep.subr.mxu0 %v902
    %1015 = vmatpush1.msra.mxu0 %v901
    %1016 = vmatprep.subr.mxu0 %v906
    %1017 = vmatpush1.msra.mxu0 %v905
    %1018 = vmatprep.subr.mxu0 %v910
    %1019 = vmatpush1.msra.mxu0 %v909
    %1020 = vmatprep.subr.mxu0 %v914
    %1021 = vmatpush1.msra.mxu0 %v913
    %1022 = vmatprep.subr.mxu0 0.0
    %1023 = vmatpush1.msra.mxu0 0.0
    %1024 = vmatprep.subr.mxu0 0.0
    %1025 = vmatpush1.msra.mxu0 0.0
    %1026 = vmatprep.subr.mxu0 0.0
    %1027 = vmatpush1.msra.mxu0 0.0
    %1028 = vmatprep.subr.mxu0 0.0
    %1029 = vmatpush1.msra.mxu0 0.0
    %1030 = vmatprep.subr.mxu0 0.0
    %1031 = vmatpush1.msra.mxu0 0.0
    %1032 = vmatprep.subr.mxu0 0.0
    %1033 = vmatpush1.msra.mxu0 0.0
    %1034 = vmatprep.subr.mxu0 0.0
    %1035 = vmatpush1.msra.mxu0 0.0
    %1036 = vmatprep.subr.mxu0 0.0
    %1037 = vmatpush1.msra.mxu0 0.0
    %1038 = vmatprep.subr.mxu0 0.0
    %1039 = vmatpush1.msra.mxu0 0.0
    %1040 = vmatprep.subr.mxu0 0.0
    %1041 = vmatpush1.msra.mxu0 0.0
    %1042 = vmatprep.subr.mxu0 0.0
    %1043 = vmatpush1.msra.mxu0 0.0
    %1044 = vmatprep.subr.mxu0 0.0
    %1045 = vmatpush1.msra.mxu0 0.0
    %1046 = vmatprep.subr.mxu0 0.0
    %1047 = vmatpush1.msra.mxu0 0.0
    %1048 = vmatprep.subr.mxu0 0.0
    %1049 = vmatpush1.msra.mxu0 0.0
    %1050 = vmatprep.subr.mxu0 0.0
    %1051 = vmatpush1.msra.mxu0 0.0
    %1052 = vmatprep.subr.mxu0 0.0
    %1053 = vmatpush1.msra.mxu0 0.0
    %1054 = vmatprep.subr.mxu0 0.0
    %1055 = vmatpush1.msra.mxu0 0.0
    %1056 = vmatprep.subr.mxu0 0.0
    %1057 = vmatpush1.msra.mxu0 0.0
    %1058 = vmatprep.subr.mxu0 0.0
    %1059 = vmatpush1.msra.mxu0 0.0
    %1060 = vmatprep.subr.mxu0 0.0
    %1061 = vmatpush1.msra.mxu0 0.0
    %1062 = vmatprep.subr.mxu0 0.0
    %1063 = vmatpush1.msra.mxu0 0.0
    %1064 = vmatprep.subr.mxu0 0.0
    %1065 = vmatpush1.msra.mxu0 0.0
    %1066 = vmatprep.subr.mxu0 0.0
    %1067 = vmatpush1.msra.mxu0 0.0
    %1068 = vmatprep.subr.mxu0 0.0
    %1069 = vmatpush1.msra.mxu0 0.0
    %1070 = vmatprep.mubr.f32.mxu0 0.0
    %1071 = vmatmul.mubr.f32.gmra.mrb[0].mxu0 %v924
    %v1072 = vpop.f32.mrb[0].mxu0
    %v1073 = vadd.f32 %v917, %v1072
    %v1074 = vpop.f32.mrb[0].mxu0
    %v1075 = vadd.f32 %v917, %v1074
    %1076 = vmatprep.mubr.f32.mxu0 0.0
    %1077 = vmatmul.mubr.f32.gmra.mrb[0].mxu0 %v927
    %v1078 = vpop.f32.mrb[0].mxu0
    %v1079 = vadd.f32 %v921, %v1078
    %v1080 = vpop.f32.mrb[0].mxu0
    %v1081 = vadd.f32 %v921, %v1080
    %1082 = vdwg.mxu0
    %v1083 = vmul.f32 %v996, %v996
    %v1084 = vmul.f32 %v998, %v998
    %v1085 = vmul.f32 %v1073, %v1073
    %v1086 = vmul.f32 %v1075, %v1075
    %v1087 = vmul.f32 %v1002, %v1002
    %v1088 = vmul.f32 %v1004, %v1004
    %v1089 = vmul.f32 %v1079, %v1079
    %v1090 = vmul.f32 %v1081, %v1081
    %v1091 = vadd.f32 %v1083, %v1087
    %v1092 = vrot.slane %v1091, 4
    %v1093 = vadd.f32 %v1091, %v1092
    %v1094 = vrot.slane %v1093, 2
    %v1095 = vadd.f32 %v1093, %v1094
    %v1096 = vrot.slane %v1095, 1
    %v1097 = vadd.f32 %v1095, %v1096
    %v1098 = vadd.f32 %v1084, %v1088
    %v1099 = vrot.slane %v1098, 4
    %v1100 = vadd.f32 %v1098, %v1099
    %v1101 = vrot.slane %v1100, 2
    %v1102 = vadd.f32 %v1100, %v1101
    %v1103 = vrot.slane %v1102, 1
    %v1104 = vadd.f32 %v1102, %v1103
    %v1105 = vadd.f32 %v1085, %v1089
    %v1106 = vrot.slane %v1105, 4
    %v1107 = vadd.f32 %v1105, %v1106
    %v1108 = vrot.slane %v1107, 2
    %v1109 = vadd.f32 %v1107, %v1108
    %v1110 = vrot.slane %v1109, 1
    %v1111 = vadd.f32 %v1109, %v1110
    %v1112 = vadd.f32 %v1086, %v1090
    %v1113 = vrot.slane %v1112, 4
    %v1114 = vadd.f32 %v1112, %v1113
    %v1115 = vrot.slane %v1114, 2
    %v1116 = vadd.f32 %v1114, %v1115
    %v1117 = vrot.slane %v1116, 1
    %v1118 = vadd.f32 %v1116, %v1117
    %v1119 = vrsqrt.pop %v1097
    %v1120 = vmul.f32 %v1097, %v1119
    %vm1121 = vcmp.eq.f32.partialorder %v1097, inf
    %v1122 = vsel %vm1121, %v1097, %v1120
    %vm1123 = vcmp.eq.f32.partialorder %v1097, 0.0
    %v1124 = vand.u32 %v1097, 2147483648
    %v1125 = vsel %vm1123, %v1124, %v1122
    %v1126 = vrsqrt.pop %v1104
    %v1127 = vmul.f32 %v1104, %v1126
    %vm1128 = vcmp.eq.f32.partialorder %v1104, inf
    %v1129 = vsel %vm1128, %v1104, %v1127
    %vm1130 = vcmp.eq.f32.partialorder %v1104, 0.0
    %v1131 = vand.u32 %v1104, 2147483648
    %v1132 = vsel %vm1130, %v1131, %v1129
    %v1133 = vrsqrt.pop %v1111
    %v1134 = vmul.f32 %v1111, %v1133
    %vm1135 = vcmp.eq.f32.partialorder %v1111, inf
    %v1136 = vsel %vm1135, %v1111, %v1134
    %vm1137 = vcmp.eq.f32.partialorder %v1111, 0.0
    %v1138 = vand.u32 %v1111, 2147483648
    %v1139 = vsel %vm1137, %v1138, %v1136
    %v1140 = vrsqrt.pop %v1118
    %v1141 = vmul.f32 %v1118, %v1140
    %vm1142 = vcmp.eq.f32.partialorder %v1118, inf
    %v1143 = vsel %vm1142, %v1118, %v1141
    %vm1144 = vcmp.eq.f32.partialorder %v1118, 0.0
    %v1145 = vand.u32 %v1118, 2147483648
    %v1146 = vsel %vm1144, %v1145, %v1143
    %v1147 = vsub.f32 0.0, %v1125
    %v1148 = vsub.f32 0.0, %v1132
    %v1149 = vsub.f32 0.0, %v1139
    %v1150 = vsub.f32 0.0, %v1146
    %v1155 = vcombine.low %v1147, %v1148
    %v1156 = vcombine.low %v1149, %v1150
    %v1158 = vunpack.c.l.s4 1966171168
    %v1159 = vunpack.c.0.s8 %v1158
    %v1160 = vlaneseq
    %v1161 = vshrl.u32 %v1160, 7
    %v1162 = vsub.s32 %v1159, %v1161
    %v1163 = vrot.slane %v1155, %v1162
    %v1165 = vunpack.c.l.s4 1966171168
    %v1166 = vunpack.c.0.s8 %v1165
    %v1167 = vlaneseq
    %v1168 = vshrl.u32 %v1167, 7
    %v1169 = vsub.s32 %v1166, %v1168
    %v1170 = vrot.slane %v1156, %v1169
    %v1171 = vcombine.low %v1163, %v1170
    %v1173 = vunpack.c.l.s4 1966171168
    %v1174 = vunpack.c.0.s8 %v1173
    %v1175 = vlaneseq
    %v1176 = vshrl.u32 %v1175, 7
    %v1177 = vsub.s32 %v1174, %v1176
    %v1178 = vrot.slane %v1171, %v1177
    %v1180 = vlaneseq
    %vm1181 = vcmp.ge.s32.totalorder %v1180, 0
    %vm1182 = vcmp.lt.s32.totalorder %v1180, 512
    %vm1183 = vmand %vm1181, %vm1182
    %1184 = vst.msk [vmem:[#allocation2] sm:$0xf] %vm1183, %v1178
    // Predicated region
    $region10: #{tpu_custom_call.1} parent=1 // pred_check
      _
    $region11: #{tpu_custom_call.1} parent=1 // pred_check_branch
      %1186 = sbr.rel (0) target = $region13
    $region12: #{tpu_custom_call.1} parent=1 // pred_region
      %s1188 = ssub.s32 64, 64
      %1189 = vsyncadd [#allocation3], %s1188
      %s1191 = sshll.u32 [#allocation2], 4
      %s1192 = int_to_ptr.vmem [resolvable:$true] %s1191
      %1194 = dma.vmem_to_hbm [thread:$0]  %s1192, 64, %s2, [#allocation3]
    $region13: #{tpu_custom_call.1} parent=1 // pred_fallthru
      _
    // Predicated region
    $region14: #{tpu_custom_call.1} parent=1 // pred_check
      _
    $region15: #{tpu_custom_call.1} parent=1 // pred_check_branch
      %1196 = sbr.rel (0) target = $region17
    $region16: #{tpu_custom_call.1} parent=1 // pred_region
      %1197 = dma.done [#allocation3], 64
    $region17: #{tpu_custom_call.1} parent=1 // pred_fallthru
      _
    %1198 = vsyncpa [#allocation3], 1

</llo_original>
